<compile_context>
chip_gen: v7x
topology: tpu7x:2x2x1
jax: 0.10.0
libtpu: 0.0.40
codegen_flags: <defaults>
</compile_context>

<pallas_src>
import functools

import jax
import jax.numpy as jnp
from jax.experimental import pallas as pl
from jax.experimental.pallas import tpu as pltpu


def _round_up(x, m):
    return ((x + m - 1) // m) * m


def _row_tile(m, cap=256):
    """Pick a row tile (multiple of 8, <= cap) and the padded row count."""
    if m <= cap:
        t = _round_up(m, 8)
        return t, t
    return cap, _round_up(m, cap)


# ----------------------------- Pallas kernels ------------------------------

def _fused_linear_kernel(*refs, has_ln, has_bias, activation, has_residual):
    idx = 0
    x_ref = refs[idx]; idx += 1
    if has_ln:
        g_ref = refs[idx]; idx += 1
        bln_ref = refs[idx]; idx += 1
    w_ref = refs[idx]; idx += 1
    if has_bias:
        b_ref = refs[idx]; idx += 1
    if has_residual:
        r_ref = refs[idx]; idx += 1
    o_ref = refs[idx]; idx += 1
    xb_ref = refs[idx]                      # VMEM scratch: (tm, K) bf16 cache

    # Compute LayerNorm + bf16 cast of this row tile only once (j == 0); the
    # cached bf16 slab is reused for every output-column tile j.
    @pl.when(pl.program_id(1) == 0)
    def _():
        x = x_ref[...].astype(jnp.float32)
        if has_ln:
            mu = jnp.mean(x, axis=-1, keepdims=True)
            var = jnp.mean((x - mu) ** 2, axis=-1, keepdims=True)
            x = (x - mu) * jax.lax.rsqrt(var + 1e-5) * g_ref[...] + bln_ref[...]
        xb_ref[...] = x.astype(jnp.bfloat16)

    w = w_ref[...]
    if w.dtype != jnp.bfloat16:             # weights are pre-cast; this is a no-op
        w = w.astype(jnp.bfloat16)
    y = jnp.dot(xb_ref[...], w, preferred_element_type=jnp.float32)
    if has_bias:
        y = y + b_ref[...]
    if activation == "gelu":
        # TODO(synk): PyTorch nn.GELU() default is exact erf; tanh approximation used here.
        y = jax.nn.gelu(y, approximate=True)
    if has_residual:
        y = y + r_ref[...].astype(jnp.float32)
    o_ref[...] = y.astype(o_ref.dtype)


def fused_linear(x, w, bias=None, ln_gamma=None, ln_beta=None,
                 activation=None, residual=None, out_dtype=jnp.bfloat16):
    """y = [LN](x) @ w [+ bias] [GELU] [+ residual].  x: (..., K), w: (K, N)."""
    orig = x.shape
    K = orig[-1]
    N = w.shape[1]
    x2 = x.reshape(-1, K)
    M = x2.shape[0]

    tm, Mpad = _row_tile(M)
    # Lane-dense output stores: pad N up to a 128 multiple (unmasked vst on the
    # single v5e store slot); tile columns at 256 when wide so the bf16 weight
    # block stays small w.r.t. v7x's 32 MiB scoped VMEM with double buffering.
    if _round_up(N, 128) <= 1024:
        tn = _round_up(N, 128)
    else:
        tn = 256
    Npad = _round_up(N, tn)

    if Mpad != M:
        x2 = jnp.pad(x2, ((0, Mpad - M), (0, 0)))
    w_p = w if Npad == N else jnp.pad(w, ((0, 0), (0, Npad - N)))

    has_ln = ln_gamma is not None
    has_bias = bias is not None
    has_res = residual is not None

    inputs = [x2]
    in_specs = [pl.BlockSpec((tm, K), lambda i, j: (i, 0))]
    if has_ln:
        inputs += [ln_gamma.reshape(1, K).astype(jnp.float32),
                   ln_beta.reshape(1, K).astype(jnp.float32)]
        in_specs += [pl.BlockSpec((1, K), lambda i, j: (0, 0)),
                     pl.BlockSpec((1, K), lambda i, j: (0, 0))]
    inputs.append(w_p)
    in_specs.append(pl.BlockSpec((K, tn), lambda i, j: (0, j)))
    if has_bias:
        b_p = bias.astype(jnp.float32)
        if Npad != N:
            b_p = jnp.pad(b_p, (0, Npad - N))
        inputs.append(b_p.reshape(1, Npad))
        in_specs.append(pl.BlockSpec((1, tn), lambda i, j: (0, j)))
    if has_res:
        r2 = residual.reshape(-1, N)
        if Mpad != M or Npad != N:
            r2 = jnp.pad(r2, ((0, Mpad - M), (0, Npad - N)))
        inputs.append(r2)
        in_specs.append(pl.BlockSpec((tm, tn), lambda i, j: (i, j)))

    out = pl.pallas_call(
        functools.partial(_fused_linear_kernel, has_ln=has_ln,
                          has_bias=has_bias, activation=activation,
                          has_residual=has_res),
        grid=(Mpad // tm, Npad // tn),
        in_specs=in_specs,
        out_specs=pl.BlockSpec((tm, tn), lambda i, j: (i, j)),
        out_shape=jax.ShapeDtypeStruct((Mpad, Npad), out_dtype),
        scratch_shapes=[pltpu.VMEM((tm, K), jnp.bfloat16)],
        compiler_params=pltpu.CompilerParams(
            # column axis must be sequential: the LN cache is (re)built at j==0
            dimension_semantics=("parallel", "arbitrary")),
    )(*inputs)
    out = out[:M, :N]
    return out.reshape(*orig[:-1], N)


def _layernorm_kernel(x_ref, g_ref, b_ref, o_ref):
    x = x_ref[...].astype(jnp.float32)
    mu = jnp.mean(x, axis=-1, keepdims=True)
    var = jnp.mean((x - mu) ** 2, axis=-1, keepdims=True)
    inv = jax.lax.rsqrt(var + 1e-5)
    o_ref[...] = ((x - mu) * inv * g_ref[...] + b_ref[...]).astype(o_ref.dtype)


def layernorm(x, g, b):
    orig = x.shape
    D = orig[-1]
    x2 = x.reshape(-1, D)
    M = x2.shape[0]
    tm, Mpad = _row_tile(M, cap=512)        # mem-bound: larger row tile
    if Mpad != M:
        x2 = jnp.pad(x2, ((0, Mpad - M), (0, 0)))
    out = pl.pallas_call(
        _layernorm_kernel,
        grid=(Mpad // tm,),
        in_specs=[pl.BlockSpec((tm, D), lambda i: (i, 0)),
                  pl.BlockSpec((1, D), lambda i: (0, 0)),
                  pl.BlockSpec((1, D), lambda i: (0, 0))],
        out_specs=pl.BlockSpec((tm, D), lambda i: (i, 0)),
        out_shape=jax.ShapeDtypeStruct((Mpad, D), jnp.float32),
        compiler_params=pltpu.CompilerParams(dimension_semantics=("parallel",)),
    )(x2, g.reshape(1, D), b.reshape(1, D))
    return out[:M].reshape(orig)


def _attn_kernel(q_ref, k_ref, v_ref, o_ref, *, scale):
    # One (batch, head) pair per grid step; q/k/v delivered as (N, dh) slabs by
    # BlockSpec -- no in-kernel lane-offset slicing or concatenation.
    q = (q_ref[0, 0] * scale).astype(jnp.bfloat16)   # scale folded into q once
    k = k_ref[0, 0].astype(jnp.bfloat16)
    v = v_ref[0, 0].astype(jnp.bfloat16)
    s = jax.lax.dot_general(q, k, (((1,), (1,)), ((), ())),
                            preferred_element_type=jnp.float32)
    s = s - jnp.max(s, axis=-1, keepdims=True)
    p = jnp.exp(s)
    p = p * pl.reciprocal(jnp.sum(p, axis=-1, keepdims=True), approx=True)
    o = jnp.dot(p.astype(jnp.bfloat16), v, preferred_element_type=jnp.float32)
    o_ref[0, 0] = o.astype(o_ref.dtype)


def multihead_attention(qkv, heads, dim_head):
    """qkv: (B, N, 3*heads*dim_head) packed -> (B, N, heads*dim_head)."""
    B, N, _ = qkv.shape
    inner = heads * dim_head
    # Head split at the DMA level: (B, N, 3, h, d) -> (3, B, h, N, d).
    qkv5 = jnp.transpose(qkv.reshape(B, N, 3, heads, dim_head), (2, 0, 3, 1, 4))
    q, k, v = qkv5[0], qkv5[1], qkv5[2]
    spec = pl.BlockSpec((1, 1, N, dim_head), lambda b, h: (b, h, 0, 0))
    out = pl.pallas_call(
        functools.partial(_attn_kernel, scale=dim_head ** -0.5),
        grid=(B, heads),
        in_specs=[spec, spec, spec],
        out_specs=spec,
        out_shape=jax.ShapeDtypeStruct((B, heads, N, dim_head), jnp.bfloat16),
        compiler_params=pltpu.CompilerParams(
            dimension_semantics=("parallel", "parallel")),
    )(q, k, v)
    return jnp.transpose(out, (0, 2, 1, 3)).reshape(B, N, inner)


def _mse_kernel(a_ref, b_ref, o_ref, acc_ref, *, denom):
    i = pl.program_id(0)

    @pl.when(i == 0)
    def _():
        acc_ref[...] = jnp.zeros_like(acc_ref)

    d = a_ref[...].astype(jnp.float32) - b_ref[...].astype(jnp.float32)
    # Accumulate a lane-wide (1, K) partial per step; the full cross-lane
    # reduction to a scalar happens only once, in the final step.
    acc_ref[...] = acc_ref[...] + jnp.sum(d * d, axis=0, keepdims=True)

    @pl.when(i == pl.num_programs(0) - 1)
    def _():
        o_ref[...] = jnp.sum(acc_ref[...], axis=-1, keepdims=True) * (1.0 / denom)


def mse_loss(a, b):
    a2 = a.reshape(-1, a.shape[-1]).astype(jnp.float32)
    b2 = b.reshape(-1, b.shape[-1]).astype(jnp.float32)
    M, K = a2.shape
    tm, Mpad = _row_tile(M, cap=512)
    if Mpad != M:                            # zero pad -> contributes 0 to the sum
        a2 = jnp.pad(a2, ((0, Mpad - M), (0, 0)))
        b2 = jnp.pad(b2, ((0, Mpad - M), (0, 0)))
    out = pl.pallas_call(
        functools.partial(_mse_kernel, denom=float(M * K)),
        grid=(Mpad // tm,),
        in_specs=[pl.BlockSpec((tm, K), lambda i: (i, 0)),
                  pl.BlockSpec((tm, K), lambda i: (i, 0))],
        out_specs=pl.BlockSpec((1, 1), lambda i: (0, 0)),
        out_shape=jax.ShapeDtypeStruct((1, 1), jnp.float32),
        scratch_shapes=[pltpu.VMEM((1, K), jnp.float32)],
        compiler_params=pltpu.CompilerParams(dimension_semantics=("arbitrary",)),
    )(a2, b2)
    return out[0, 0]


# ------------------------- transformer building blocks ----------------------

def attention_block(x, p, heads, dim_head):
    # Fused LN -> QKV projection (no bias in the reference attention).
    qkv = fused_linear(x, p["w_qkv"], ln_gamma=p["ln_g"], ln_beta=p["ln_b"])
    o = multihead_attention(qkv, heads, dim_head)
    # Output projection with the residual add fused in.
    return fused_linear(o, p["w_o"], bias=p["b_o"], residual=x)


def ff_block(x, p):
    h = fused_linear(x, p["w1"], bias=p["b1"],
                     ln_gamma=p["ln_g"], ln_beta=p["ln_b"], activation="gelu")
    return fused_linear(h, p["w2"], bias=p["b2"], residual=x)


def transformer_body(x, p, heads, dim_head):
    """Transformer WITHOUT the final LayerNorm (fused into the next projection)."""
    for layer in p["layers"]:
        x = attention_block(x, layer["attn"], heads, dim_head)   # attn(x) + x
        x = ff_block(x, layer["ff"])                              # ff(x) + x
    return x


def init_transformer(key, dim, depth, heads, dim_head, mlp_dim):
    inner = heads * dim_head
    bf16 = jnp.bfloat16
    layers = []
    for _ in range(depth):
        key, k1, k2, k3, k4 = jax.random.split(key, 5)
        attn = dict(
            ln_g=jnp.ones((dim,), jnp.float32), ln_b=jnp.zeros((dim,), jnp.float32),
            w_qkv=(jax.random.normal(k1, (dim, 3 * inner), jnp.float32) * 0.02).astype(bf16),
            w_o=(jax.random.normal(k2, (inner, dim), jnp.float32) * 0.02).astype(bf16),
            b_o=jnp.zeros((dim,), jnp.float32),
        )
        ff = dict(
            ln_g=jnp.ones((dim,), jnp.float32), ln_b=jnp.zeros((dim,), jnp.float32),
            w1=(jax.random.normal(k3, (dim, mlp_dim), jnp.float32) * 0.02).astype(bf16),
            b1=jnp.zeros((mlp_dim,), jnp.float32),
            w2=(jax.random.normal(k4, (mlp_dim, dim), jnp.float32) * 0.02).astype(bf16),
            b2=jnp.zeros((dim,), jnp.float32),
        )
        layers.append(dict(attn=attn, ff=ff))
    return dict(layers=layers,
                final_ln_g=jnp.ones((dim,), jnp.float32),
                final_ln_b=jnp.zeros((dim,), jnp.float32))


# --------------------------------- MAE forward ------------------------------

def mae_forward(params, img, mask_key, *, patch_size, masking_ratio,
                enc_heads, enc_dim_head, dec_heads, dec_dim_head):
    B, C, H, W = img.shape
    p = patch_size

    # to_patch: 'b c (h p1) (w p2) -> b (h w) (p1 p2 c)'
    patches = img.reshape(B, C, H // p, p, W // p, p)
    patches = jnp.transpose(patches, (0, 2, 4, 3, 5, 1)).reshape(
        B, (H // p) * (W // p), p * p * C)
    num_patches = patches.shape[1]

    # patch_to_emb: LayerNorm -> Linear (fused) -> LayerNorm
    t = fused_linear(patches, params["pe_w"], bias=params["pe_b"],
                     ln_gamma=params["pe_ln1_g"], ln_beta=params["pe_ln1_b"],
                     out_dtype=jnp.float32)
    tokens = layernorm(t, params["pe_ln2_g"], params["pe_ln2_b"])

    # positional embedding (encoder.pool == 'cls')
    tokens = tokens + params["pos_embedding"][:, 1:num_patches + 1]

    # random masking (torch.rand(...).argsort equivalent)
    num_masked = int(masking_ratio * num_patches)
    rand = jax.random.uniform(mask_key, (B, num_patches))
    rand_indices = jnp.argsort(rand, axis=-1)
    masked_indices = rand_indices[:, :num_masked]
    unmasked_indices = rand_indices[:, num_masked:]
    batch_range = jnp.arange(B)[:, None]

    tokens = tokens[batch_range, unmasked_indices]
    masked_patches = patches[batch_range, masked_indices]

    # encoder transformer on unmasked tokens; its final LayerNorm is fused into
    # the enc_to_dec projection below (LN is row-wise -> fusion is exact).
    encoded = transformer_body(tokens, params["encoder"], enc_heads, enc_dim_head)
    dec_unmasked = fused_linear(encoded, params["e2d_w"], bias=params["e2d_b"],
                                ln_gamma=params["encoder"]["final_ln_g"],
                                ln_beta=params["encoder"]["final_ln_b"],
                                out_dtype=jnp.float32)
    dec_unmasked = dec_unmasked + params["dec_pos_emb"][unmasked_indices]

    mask_toks = params["mask_token"][None, None, :] + params["dec_pos_emb"][masked_indices]

    dec_dim = params["mask_token"].shape[0]
    dec_in = jnp.zeros((B, num_patches, dec_dim), jnp.float32)
    dec_in = dec_in.at[batch_range, unmasked_indices].set(dec_unmasked)
    dec_in = dec_in.at[batch_range, masked_indices].set(mask_toks)

    # decoder transformer; its final LayerNorm is fused into to_pixels (applied
    # after the row gather -- identical result, LN is per-token).
    decoded = transformer_body(dec_in, params["decoder"], dec_heads, dec_dim_head)
    decoded_masked = decoded[batch_range, masked_indices]
    pred_pixel_values = fused_linear(decoded_masked, params["tp_w"], bias=params["tp_b"],
                                     ln_gamma=params["decoder"]["final_ln_g"],
                                     ln_beta=params["decoder"]["final_ln_b"],
                                     out_dtype=jnp.float32)

    recon_loss = mse_loss(pred_pixel_values, masked_patches)

    # reconstruct_image: 'b (h w) (p1 p2 c) -> b c (h p1) (w p2)'
    def unpatchify(pt):
        h, w = H // p, W // p
        x = pt.reshape(B, h, w, p, p, C)
        x = jnp.transpose(x, (0, 5, 1, 3, 2, 4))
        return x.reshape(B, C, H, W)

    original_image = unpatchify(patches)
    masked_image = unpatchify(patches.at[batch_range, masked_indices].set(0.0))
    reconstructed_image = unpatchify(
        patches.at[batch_range, masked_indices].set(pred_pixel_values))

    return recon_loss, original_image, masked_image, reconstructed_image


# ------------------------------------ main -----------------------------------

if __name__ == "__main__":
    B, C, H, W = 2, 4, 16, 16
    PATCH = 8
    MASK_RATIO = 0.75
    ENC_DIM, ENC_DEPTH, ENC_HEADS, ENC_DIM_HEAD, ENC_MLP = 48, 1, 4, 16, 96
    DEC_DIM, DEC_DEPTH, DEC_HEADS, DEC_DIM_HEAD = 32, 1, 2, 16

    num_patches = (H // PATCH) * (W // PATCH)          # 4
    patch_dim = PATCH * PATCH * C                      # 256

    root = jax.random.PRNGKey(0)
    k_img, k_mask, k_params = jax.random.split(root, 3)
    keys = jax.random.split(k_params, 8)

    params = dict(
        pos_embedding=jax.random.normal(keys[0], (1, num_patches + 1, ENC_DIM), jnp.float32) * 0.02,
        pe_ln1_g=jnp.ones((patch_dim,), jnp.float32),
        pe_ln1_b=jnp.zeros((patch_dim,), jnp.float32),
        pe_w=(jax.random.normal(keys[1], (patch_dim, ENC_DIM), jnp.float32) * 0.02).astype(jnp.bfloat16),
        pe_b=jnp.zeros((ENC_DIM,), jnp.float32),
        pe_ln2_g=jnp.ones((ENC_DIM,), jnp.float32),
        pe_ln2_b=jnp.zeros((ENC_DIM,), jnp.float32),
        encoder=init_transformer(keys[2], ENC_DIM, ENC_DEPTH, ENC_HEADS, ENC_DIM_HEAD, ENC_MLP),
        e2d_w=(jax.random.normal(keys[3], (ENC_DIM, DEC_DIM), jnp.float32) * 0.02).astype(jnp.bfloat16),
        e2d_b=jnp.zeros((DEC_DIM,), jnp.float32),
        mask_token=jax.random.normal(keys[4], (DEC_DIM,), jnp.float32),
        decoder=init_transformer(keys[5], DEC_DIM, DEC_DEPTH, DEC_HEADS, DEC_DIM_HEAD, DEC_DIM * 4),
        dec_pos_emb=jax.random.normal(keys[6], (num_patches, DEC_DIM), jnp.float32) * 0.02,
        tp_w=(jax.random.normal(keys[7], (DEC_DIM, patch_dim), jnp.float32) * 0.02).astype(jnp.bfloat16),
        tp_b=jnp.zeros((patch_dim,), jnp.float32),
    )

    img = jax.random.normal(k_img, (B, C, H, W), jnp.float32)

    out = mae_forward(params, img, k_mask,
                      patch_size=PATCH, masking_ratio=MASK_RATIO,
                      enc_heads=ENC_HEADS, enc_dim_head=ENC_DIM_HEAD,
                      dec_heads=DEC_HEADS, dec_dim_head=DEC_DIM_HEAD)
    out = jax.block_until_ready(out)

    recon_loss, original_image, masked_image, reconstructed_image = out
    assert recon_loss.shape == ()
    assert original_image.shape == (B, C, H, W)
    assert masked_image.shape == (B, C, H, W)
    assert reconstructed_image.shape == (B, C, H, W)
    assert jnp.isfinite(recon_loss)

    print("KERNEL_OK")
</pallas_src>

<mosaic_0001>
module attributes {stable_mosaic.version = 11 : i64} {
  func.func @_fused_linear_kernel(%arg0: i32, %arg1: i32, %arg2: memref<8x256xf32, #tpu.memory_space<vmem>>, %arg3: memref<1x256xf32, #tpu.memory_space<vmem>>, %arg4: memref<1x256xf32, #tpu.memory_space<vmem>>, %arg5: memref<256x128xbf16, #tpu.memory_space<vmem>>, %arg6: memref<1x128xf32, #tpu.memory_space<vmem>>, %arg7: memref<8x128xf32, #tpu.memory_space<vmem>>, %arg8: memref<8x256xbf16, #tpu.memory_space<vmem>>) attributes {dimension_semantics = [#tpu.dimension_semantics<parallel>, #tpu.dimension_semantics<arbitrary>], iteration_bounds = array<i64: 1, 1>, scalar_prefetch = 0 : i64, scratch_operands = 1 : i64, tpu.core_type = #tpu.core_type<tc>, window_params = [{transform_indices = @transform_0, window_bounds = array<i64: 8, 256>}, {pipeline_mode = #tpu.pipeline_mode<synchronous>, transform_indices = @transform_1, window_bounds = array<i64: 1, 256>}, {pipeline_mode = #tpu.pipeline_mode<synchronous>, transform_indices = @transform_2, window_bounds = array<i64: 1, 256>}, {transform_indices = @transform_3, window_bounds = array<i64: 256, 128>}, {transform_indices = @transform_4, window_bounds = array<i64: 1, 128>}, {transform_indices = @transform_5, window_bounds = array<i64: 8, 128>}]} {
    %c0_i32 = arith.constant 0 : i32
    %0 = arith.cmpi eq, %arg1, %c0_i32 : i32
    %1 = arith.extui %0 : i1 to i32
    %c0_i32_0 = arith.constant 0 : i32
    %2 = arith.cmpi ne, %1, %c0_i32_0 : i32
    scf.if %2 {
      %c0_8 = arith.constant 0 : index
      %c0_9 = arith.constant 0 : index
      %10 = vector.load %arg2[%c0_8, %c0_9] : memref<8x256xf32, #tpu.memory_space<vmem>>, vector<8x256xf32>
      %cst_10 = arith.constant dense<0.000000e+00> : vector<8xf32>
      %11 = vector.multi_reduction <add>, %10, %cst_10 [1] : vector<8x256xf32> to vector<8xf32>
      %12 = vector.shape_cast %11 : vector<8xf32> to vector<8x1xf32>
      %cst_11 = arith.constant 2.560000e+02 : f32
      %13 = vector.broadcast %cst_11 : f32 to vector<8x1xf32>
      %14 = arith.divf %12, %13 : vector<8x1xf32>
      %15 = vector.broadcast %14 : vector<8x1xf32> to vector<8x256xf32>
      %16 = arith.subf %10, %15 : vector<8x256xf32>
      %17 = arith.mulf %16, %16 : vector<8x256xf32>
      %cst_12 = arith.constant dense<0.000000e+00> : vector<8xf32>
      %18 = vector.multi_reduction <add>, %17, %cst_12 [1] : vector<8x256xf32> to vector<8xf32>
      %19 = vector.shape_cast %18 : vector<8xf32> to vector<8x1xf32>
      %cst_13 = arith.constant 2.560000e+02 : f32
      %20 = vector.broadcast %cst_13 : f32 to vector<8x1xf32>
      %21 = arith.divf %19, %20 : vector<8x1xf32>
      %22 = vector.broadcast %14 : vector<8x1xf32> to vector<8x256xf32>
      %23 = arith.subf %10, %22 : vector<8x256xf32>
      %cst_14 = arith.constant 9.99999974E-6 : f32
      %24 = vector.broadcast %cst_14 : f32 to vector<8x1xf32>
      %25 = arith.addf %21, %24 : vector<8x1xf32>
      %26 = math.rsqrt %25 : vector<8x1xf32>
      %27 = vector.broadcast %26 : vector<8x1xf32> to vector<8x256xf32>
      %28 = arith.mulf %23, %27 : vector<8x256xf32>
      %c0_15 = arith.constant 0 : index
      %c0_16 = arith.constant 0 : index
      %29 = vector.load %arg3[%c0_15, %c0_16] : memref<1x256xf32, #tpu.memory_space<vmem>>, vector<1x256xf32>
      %30 = vector.broadcast %29 : vector<1x256xf32> to vector<8x256xf32>
      %31 = arith.mulf %28, %30 : vector<8x256xf32>
      %c0_17 = arith.constant 0 : index
      %c0_18 = arith.constant 0 : index
      %32 = vector.load %arg4[%c0_17, %c0_18] : memref<1x256xf32, #tpu.memory_space<vmem>>, vector<1x256xf32>
      %33 = vector.broadcast %32 : vector<1x256xf32> to vector<8x256xf32>
      %34 = arith.addf %31, %33 : vector<8x256xf32>
      %35 = arith.truncf %34 : vector<8x256xf32> to vector<8x256xbf16>
      %c0_19 = arith.constant 0 : index
      %c0_20 = arith.constant 0 : index
      %36 = vector.load %arg8[%c0_19, %c0_20] : memref<8x256xbf16, #tpu.memory_space<vmem>>, vector<8x256xbf16>
      tpu.vector_store %arg8[%c0_19, %c0_20], %35 {strides = array<i32>} : memref<8x256xbf16, #tpu.memory_space<vmem>>, vector<8x256xbf16>,
    } else {
    }
    %c0 = arith.constant 0 : index
    %c0_1 = arith.constant 0 : index
    %3 = vector.load %arg5[%c0, %c0_1] : memref<256x128xbf16, #tpu.memory_space<vmem>>, vector<256x128xbf16>
    %c0_2 = arith.constant 0 : index
    %c0_3 = arith.constant 0 : index
    %4 = vector.load %arg8[%c0_2, %c0_3] : memref<8x256xbf16, #tpu.memory_space<vmem>>, vector<8x256xbf16>
    %cst = arith.constant dense<0.000000e+00> : vector<8x128xf32>
    %5 = tpu.matmul %4, %3, %cst {dimension_numbers = #tpu.dot_dimension_numbers<[1], [0], [0], [1], [0, 0, 1, 1], [], []>} : vector<8x256xbf16>, vector<256x128xbf16>, vector<8x128xf32> -> vector<8x128xf32>
    %c0_4 = arith.constant 0 : index
    %c0_5 = arith.constant 0 : index
    %6 = vector.load %arg6[%c0_4, %c0_5] : memref<1x128xf32, #tpu.memory_space<vmem>>, vector<1x128xf32>
    %7 = vector.broadcast %6 : vector<1x128xf32> to vector<8x128xf32>
    %8 = arith.addf %5, %7 : vector<8x128xf32>
    %c0_6 = arith.constant 0 : index
    %c0_7 = arith.constant 0 : index
    %9 = vector.load %arg7[%c0_6, %c0_7] : memref<8x128xf32, #tpu.memory_space<vmem>>, vector<8x128xf32>
    tpu.vector_store %arg7[%c0_6, %c0_7], %8 {strides = array<i32>} : memref<8x128xf32, #tpu.memory_space<vmem>>, vector<8x128xf32>,
    return
  }
  func.func @transform_0(%arg0: i32, %arg1: i32) -> (i32, i32) {
    %c0_i32 = arith.constant 0 : i32
    %c0_i32_0 = arith.constant 0 : i32
    return %arg0, %c0_i32 : i32, i32
  }
  func.func @transform_1(%arg0: i32, %arg1: i32) -> (i32, i32) {
    %c0_i32 = arith.constant 0 : i32
    %c0_i32_0 = arith.constant 0 : i32
    %c0_i32_1 = arith.constant 0 : i32
    return %c0_i32, %c0_i32_0 : i32, i32
  }
  func.func @transform_2(%arg0: i32, %arg1: i32) -> (i32, i32) {
    %c0_i32 = arith.constant 0 : i32
    %c0_i32_0 = arith.constant 0 : i32
    %c0_i32_1 = arith.constant 0 : i32
    return %c0_i32, %c0_i32_0 : i32, i32
  }
  func.func @transform_3(%arg0: i32, %arg1: i32) -> (i32, i32) {
    %c0_i32 = arith.constant 0 : i32
    %c0_i32_0 = arith.constant 0 : i32
    return %c0_i32, %arg1 : i32, i32
  }
  func.func @transform_4(%arg0: i32, %arg1: i32) -> (i32, i32) {
    %c0_i32 = arith.constant 0 : i32
    %c0_i32_0 = arith.constant 0 : i32
    return %c0_i32, %arg1 : i32, i32
  }
  func.func @transform_5(%arg0: i32, %arg1: i32) -> (i32, i32) {
    %c0_i32 = arith.constant 0 : i32
    return %arg0, %arg1 : i32, i32
  }
}

</mosaic_0001>

<llo_original>
// kernel: tpu_custom_call.1
$region0: #{tpu_custom_call.1}
  #allocation0 [shape = 'u32[]', space=smem, size = 0x4, offset = 0x4, fixed_abs, tag = 'smem constant byte address 0x4 - core index']
  #allocation1 [shape = 'u32[144,128]{1,0:T(1,128)}', space=vmem, size = 0x12000, scoped, tag = 'internal scratch']
  #allocation2 [shape = 'bf16[8,256]{1,0:T(8,128)(2,1)}', space=vmem, size = 0x1000, scoped, tag = 'scratch operand']
  %s0 = inlined_call_operand.hbm [shape: f32[8,256], index: 0, kind: input, shape index: {}]
  %s1 = inlined_call_operand.vmem [shape: f32[1,256], index: 1, kind: input, shape index: {}]
  %s2 = inlined_call_operand.vmem [shape: f32[1,256], index: 2, kind: input, shape index: {}]
  %s3 = inlined_call_operand.hbm [shape: bf16[256,128], index: 3, kind: input, shape index: {}]
  %s4 = inlined_call_operand.vmem [shape: f32[1,128], index: 4, kind: input, shape index: {}]
  %s5 = inlined_call_operand.hbm [shape: f32[8,128], index: 5, kind: output, shape index: {}]
  %s6 = sld [smem:[#allocation0]]
  $region42: #{tpu_custom_call.1} parent=0
    _
  %s8 = ssub.s32 1, %s6
  %s9 = scalar_select 0, %s8, %s6
  $region1: #{tpu_custom_call.1} parent=0
    #allocation3 [shape = 'u8[8192]{0}', space=vmem, size = 0x2000, scoped, tag = 'input window, operand 0, single buffered']
    #allocation4 [shape = 's32[1]{0}', space=sflag, size = 0x4, scoped, tag = 'scoped memory for tpu_custom_call.1']
    #allocation5 [shape = 's32[1]{0}', space=sflag, size = 0x4, scoped, tag = 'scoped memory for tpu_custom_call.1']
    #allocation6 [shape = 'u8[65536]{0}', space=vmem, size = 0x10000, scoped, tag = 'input window, operand 3, single buffered']
    #allocation7 [shape = 's32[1]{0}', space=sflag, size = 0x4, scoped, tag = 'scoped memory for tpu_custom_call.1']
    #allocation8 [shape = 'u8[4096]{0}', space=vmem, size = 0x1000, scoped, tag = 'output window, operand 0, single buffered']
    %10 = vsyncpa [#allocation4], 0
    %11 = vsyncpa [#allocation7], 0
    %12 = vsyncpa [#allocation5], 0
    // Predicated region
    $region2: #{tpu_custom_call.1} parent=1 // pred_check
      _
    $region3: #{tpu_custom_call.1} parent=1 // pred_check_branch
      %14 = sbr.rel (0) target = $region5
    $region4: #{tpu_custom_call.1} parent=1 // pred_region
      %s16 = ssub.s32 256, 256
      %17 = vsyncadd [#allocation4], %s16
      %s19 = sshll.u32 [#allocation3], 4
      %s20 = int_to_ptr.vmem [resolvable:$true] %s19
      %22 = dma.hbm_to_vmem [thread:$0]  %s0, 256, %s20, [#allocation4]
    $region5: #{tpu_custom_call.1} parent=1 // pred_fallthru
      _
    // Predicated region
    $region6: #{tpu_custom_call.1} parent=1 // pred_check
      _
    $region7: #{tpu_custom_call.1} parent=1 // pred_check_branch
      %24 = sbr.rel (0) target = $region9
    $region8: #{tpu_custom_call.1} parent=1 // pred_region
      _
    $region9: #{tpu_custom_call.1} parent=1 // pred_fallthru
      _
    // Predicated region
    $region10: #{tpu_custom_call.1} parent=1 // pred_check
      _
    $region11: #{tpu_custom_call.1} parent=1 // pred_check_branch
      %26 = sbr.rel (0) target = $region13
    $region12: #{tpu_custom_call.1} parent=1 // pred_region
      _
    $region13: #{tpu_custom_call.1} parent=1 // pred_fallthru
      _
    // Predicated region
    $region14: #{tpu_custom_call.1} parent=1 // pred_check
      _
    $region15: #{tpu_custom_call.1} parent=1 // pred_check_branch
      %28 = sbr.rel (0) target = $region17
    $region16: #{tpu_custom_call.1} parent=1 // pred_region
      %s30 = ssub.s32 2048, 2048
      %31 = vsyncadd [#allocation7], %s30
      %s32 = sshll.u32 [#allocation6], 4
      %s33 = int_to_ptr.vmem [resolvable:$true] %s32
      %38 = dma.hbm_to_vmem [thread:$0]  %s3, 2048, %s33, [#allocation7], 64, 64, 4
    $region17: #{tpu_custom_call.1} parent=1 // pred_fallthru
      _
    // Predicated region
    $region18: #{tpu_custom_call.1} parent=1 // pred_check
      _
    $region19: #{tpu_custom_call.1} parent=1 // pred_check_branch
      %40 = sbr.rel (0) target = $region21
    $region20: #{tpu_custom_call.1} parent=1 // pred_region
      _
    $region21: #{tpu_custom_call.1} parent=1 // pred_fallthru
      _
    // Predicated region
    $region22: #{tpu_custom_call.1} parent=1 // pred_check
      _
    $region23: #{tpu_custom_call.1} parent=1 // pred_check_branch
      %42 = sbr.rel (0) target = $region25
    $region24: #{tpu_custom_call.1} parent=1 // pred_region
      %43 = dma.done [#allocation4], 256
    $region25: #{tpu_custom_call.1} parent=1 // pred_fallthru
      _
    // Predicated region
    $region26: #{tpu_custom_call.1} parent=1 // pred_check
      _
    $region27: #{tpu_custom_call.1} parent=1 // pred_check_branch
      %45 = sbr.rel (0) target = $region29
    $region28: #{tpu_custom_call.1} parent=1 // pred_region
      %46 = dma.done [#allocation7], 2048
    $region29: #{tpu_custom_call.1} parent=1 // pred_fallthru
      _
    %p48 = scmp.eq.s32.totalorder 0, 0
    // Predicated region
    $region30: #{tpu_custom_call.1} parent=1 // pred_check
      %p49 = pneg %p48
    $region31: #{tpu_custom_call.1} parent=1 // pred_check_branch
      %51 = sbr.rel (%p49) target = $region33
    $region32: #{tpu_custom_call.1} parent=1 // pred_region
      %v52 = vld [vmem:[#allocation3] sm:$0xff]
      %v53 = vld [vmem:[#allocation3 + $0x8] sm:$0xff]
      %v54 = vadd.f32 %v52, %v53
      %55 = vadd.xlane.f32.xlu0 %v54
      %v56 = vpop.xlane.xlu0 %55
      %v57 = vrcp.pop 256.0
      %v58 = vmul.f32 %v56, %v57
      %v59 = vsub.f32 %v52, %v58
      %v60 = vsub.f32 %v53, %v58
      %v61 = vmul.f32 %v59, %v59
      %v62 = vmul.f32 %v60, %v60
      %v63 = vadd.f32 %v61, %v62
      %64 = vadd.xlane.f32.xlu0 %v63
      %v65 = vpop.xlane.xlu0 %64
      %v66 = vmul.f32 %v65, %v57
      %v67 = vadd.f32 %v66, 1e-05
      %v68 = vrsqrt.pop %v67
      %v69 = vmul.f32 %v59, %v68
      %v70 = vmul.f32 %v60, %v68
      %v71 = vld [vmem:[%s1] sm:$0x3]
      %v73 = vlaneseq
      %v74 = vshrl.u32 %v73, 7
      %v75 = vsub.s32 0, %v74
      %v76 = vrot.slane %v71, %v75
      %v77 = vlaneseq
      %v78 = vshrl.u32 %v77, 7
      %v79 = vsub.s32 1, %v78
      %v80 = vrot.slane %v71, %v79
      %v83 = vmul.f32 %v69, %v76
      %v84 = vmul.f32 %v70, %v80
      %v85 = vld [vmem:[%s2] sm:$0x3]
      %v87 = vlaneseq
      %v88 = vshrl.u32 %v87, 7
      %v89 = vsub.s32 0, %v88
      %v90 = vrot.slane %v85, %v89
      %v91 = vlaneseq
      %v92 = vshrl.u32 %v91, 7
      %v93 = vsub.s32 1, %v92
      %v94 = vrot.slane %v85, %v93
      %v97 = vadd.f32 %v83, %v90
      %v98 = vadd.f32 %v84, %v94
      %v99 = vpack.c.bf16 %v97, %v97
      %v100 = vpack.c.bf16 %v98, %v98
      %v103 = vunpack.c.l.b16 %v99
      %v104 = vunpack.c.l.b16 %v100
      %v105 = vpack.c.b16 %v104, %v103
      %107 = vst [vmem:[#allocation2] sm:$0xff] %v105
    $region33: #{tpu_custom_call.1} parent=1 // pred_fallthru
      _
    %v108 = vld [vmem:[#allocation6] sm:$0xf]
    %v109 = vld [vmem:[#allocation6 + $0x4] sm:$0xf]
    %v110 = vld [vmem:[#allocation6 + $0x8] sm:$0xf]
    %v111 = vld [vmem:[#allocation6 + $0xc] sm:$0xf]
    %v112 = vld [vmem:[#allocation6 + $0x10] sm:$0xf]
    %v113 = vld [vmem:[#allocation6 + $0x14] sm:$0xf]
    %v114 = vld [vmem:[#allocation6 + $0x18] sm:$0xf]
    %v115 = vld [vmem:[#allocation6 + $0x1c] sm:$0xf]
    %v116 = vld [vmem:[#allocation6 + $0x20] sm:$0xf]
    %v117 = vld [vmem:[#allocation6 + $0x24] sm:$0xf]
    %v118 = vld [vmem:[#allocation6 + $0x28] sm:$0xf]
    %v119 = vld [vmem:[#allocation6 + $0x2c] sm:$0xf]
    %v120 = vld [vmem:[#allocation6 + $0x30] sm:$0xf]
    %v121 = vld [vmem:[#allocation6 + $0x34] sm:$0xf]
    %v122 = vld [vmem:[#allocation6 + $0x38] sm:$0xf]
    %v123 = vld [vmem:[#allocation6 + $0x3c] sm:$0xf]
    %v124 = vld [vmem:[#allocation6 + $0x40] sm:$0xf]
    %v125 = vld [vmem:[#allocation6 + $0x44] sm:$0xf]
    %v126 = vld [vmem:[#allocation6 + $0x48] sm:$0xf]
    %v127 = vld [vmem:[#allocation6 + $0x4c] sm:$0xf]
    %v128 = vld [vmem:[#allocation6 + $0x50] sm:$0xf]
    %v129 = vld [vmem:[#allocation6 + $0x54] sm:$0xf]
    %v130 = vld [vmem:[#allocation6 + $0x58] sm:$0xf]
    %v131 = vld [vmem:[#allocation6 + $0x5c] sm:$0xf]
    %v132 = vld [vmem:[#allocation6 + $0x60] sm:$0xf]
    %v133 = vld [vmem:[#allocation6 + $0x64] sm:$0xf]
    %v134 = vld [vmem:[#allocation6 + $0x68] sm:$0xf]
    %v135 = vld [vmem:[#allocation6 + $0x6c] sm:$0xf]
    %v136 = vld [vmem:[#allocation6 + $0x70] sm:$0xf]
    %v137 = vld [vmem:[#allocation6 + $0x74] sm:$0xf]
    %v138 = vld [vmem:[#allocation6 + $0x78] sm:$0xf]
    %v139 = vld [vmem:[#allocation6 + $0x7c] sm:$0xf]
    %v140 = vld [vmem:[#allocation2] sm:$0xff]
    %v141 = vld [vmem:[%s4] sm:$0x1]
    %v143 = vlaneseq
    %v144 = vshrl.u32 %v143, 7
    %v145 = vsub.s32 0, %v144
    %v146 = vrot.slane %v141, %v145
    %v149 = vunpack.c.l.b16 %v140
    %v150 = vunpack.c.h.b16 %v140
    %v151 = vpack.c.b16 %v149, %v149
    %v152 = vpack.c.b16 %v150, %v150
    %v187 = vunpack.c.l.b16 %v108
    %v188 = vunpack.c.l.b16 %v109
    %v189 = vunpack.c.l.b16 %v110
    %v190 = vunpack.c.l.b16 %v111
    %v191 = vunpack.c.l.b16 %v112
    %v192 = vunpack.c.l.b16 %v113
    %v193 = vunpack.c.l.b16 %v114
    %v194 = vunpack.c.l.b16 %v115
    %v195 = vunpack.c.l.b16 %v116
    %v196 = vunpack.c.l.b16 %v117
    %v197 = vunpack.c.l.b16 %v118
    %v198 = vunpack.c.l.b16 %v119
    %v199 = vunpack.c.l.b16 %v120
    %v200 = vunpack.c.l.b16 %v121
    %v201 = vunpack.c.l.b16 %v122
    %v202 = vunpack.c.l.b16 %v123
    %v203 = vunpack.c.l.b16 %v124
    %v204 = vunpack.c.l.b16 %v125
    %v205 = vunpack.c.l.b16 %v126
    %v206 = vunpack.c.l.b16 %v127
    %v207 = vunpack.c.l.b16 %v128
    %v208 = vunpack.c.l.b16 %v129
    %v209 = vunpack.c.l.b16 %v130
    %v210 = vunpack.c.l.b16 %v131
    %v211 = vunpack.c.l.b16 %v132
    %v212 = vunpack.c.l.b16 %v133
    %v213 = vunpack.c.l.b16 %v134
    %v214 = vunpack.c.l.b16 %v135
    %v215 = vunpack.c.l.b16 %v136
    %v216 = vunpack.c.l.b16 %v137
    %v217 = vunpack.c.l.b16 %v138
    %v218 = vunpack.c.l.b16 %v139
    %v219 = vpack.c.b16 %v188, %v187
    %v220 = vpack.c.b16 %v190, %v189
    %v221 = vpack.c.b16 %v192, %v191
    %v222 = vpack.c.b16 %v194, %v193
    %v223 = vpack.c.b16 %v196, %v195
    %v224 = vpack.c.b16 %v198, %v197
    %v225 = vpack.c.b16 %v200, %v199
    %v226 = vpack.c.b16 %v202, %v201
    %v227 = vpack.c.b16 %v204, %v203
    %v228 = vpack.c.b16 %v206, %v205
    %v229 = vpack.c.b16 %v208, %v207
    %v230 = vpack.c.b16 %v210, %v209
    %v231 = vpack.c.b16 %v212, %v211
    %v232 = vpack.c.b16 %v214, %v213
    %v233 = vpack.c.b16 %v216, %v215
    %v234 = vpack.c.b16 %v218, %v217
    %251 = vmatprep.subr.bf16.mxu0 0
    %252 = vmatpush1.bf16.msra.mxu0 %v219
    %253 = vmatprep.subr.bf16.mxu0 0
    %254 = vmatpush1.bf16.msra.mxu0 %v220
    %255 = vmatprep.subr.bf16.mxu0 0
    %256 = vmatpush1.bf16.msra.mxu0 %v221
    %257 = vmatprep.subr.bf16.mxu0 0
    %258 = vmatpush1.bf16.msra.mxu0 %v222
    %259 = vmatprep.subr.bf16.mxu0 0
    %260 = vmatpush1.bf16.msra.mxu0 %v223
    %261 = vmatprep.subr.bf16.mxu0 0
    %262 = vmatpush1.bf16.msra.mxu0 %v224
    %263 = vmatprep.subr.bf16.mxu0 0
    %264 = vmatpush1.bf16.msra.mxu0 %v225
    %265 = vmatprep.subr.bf16.mxu0 0
    %266 = vmatpush1.bf16.msra.mxu0 %v226
    %267 = vmatprep.subr.bf16.mxu0 0
    %268 = vmatpush1.bf16.msra.mxu0 %v227
    %269 = vmatprep.subr.bf16.mxu0 0
    %270 = vmatpush1.bf16.msra.mxu0 %v228
    %271 = vmatprep.subr.bf16.mxu0 0
    %272 = vmatpush1.bf16.msra.mxu0 %v229
    %273 = vmatprep.subr.bf16.mxu0 0
    %274 = vmatpush1.bf16.msra.mxu0 %v230
    %275 = vmatprep.subr.bf16.mxu0 0
    %276 = vmatpush1.bf16.msra.mxu0 %v231
    %277 = vmatprep.subr.bf16.mxu0 0
    %278 = vmatpush1.bf16.msra.mxu0 %v232
    %279 = vmatprep.subr.bf16.mxu0 0
    %280 = vmatpush1.bf16.msra.mxu0 %v233
    %281 = vmatprep.subr.bf16.mxu0 0
    %282 = vmatpush1.bf16.msra.mxu0 %v234
    %283 = vmatprep.mubr.bf16.mxu0 %v152
    %284 = vmatmul.mubr.bf16.gmra.mrb[0].mxu0 %v151
    %v285 = vpop.f32.mrb[0].mxu0
    %v286 = vadd.f32 %v146, %v285
    %v287 = vpop.f32.mrb[0].mxu0
    %v288 = vpop.f32.mrb[0].mxu0
    %v289 = vpop.f32.mrb[0].mxu0
    %290 = vdwg.mxu0
    %291 = vst [vmem:[#allocation8] sm:$0xff] %v286
    // Predicated region
    $region34: #{tpu_custom_call.1} parent=1 // pred_check
      _
    $region35: #{tpu_custom_call.1} parent=1 // pred_check_branch
      %293 = sbr.rel (0) target = $region37
    $region36: #{tpu_custom_call.1} parent=1 // pred_region
      %s295 = ssub.s32 128, 128
      %296 = vsyncadd [#allocation5], %s295
      %s298 = sshll.u32 [#allocation8], 4
      %s299 = int_to_ptr.vmem [resolvable:$true] %s298
      %301 = dma.vmem_to_hbm [thread:$0]  %s299, 128, %s5, [#allocation5]
    $region37: #{tpu_custom_call.1} parent=1 // pred_fallthru
      _
    // Predicated region
    $region38: #{tpu_custom_call.1} parent=1 // pred_check
      _
    $region39: #{tpu_custom_call.1} parent=1 // pred_check_branch
      %303 = sbr.rel (0) target = $region41
    $region40: #{tpu_custom_call.1} parent=1 // pred_region
      %304 = dma.done [#allocation5], 128
    $region41: #{tpu_custom_call.1} parent=1 // pred_fallthru
      _
    %305 = vsyncpa [#allocation4], 1
    %306 = vsyncpa [#allocation7], 1
    %307 = vsyncpa [#allocation5], 1

</llo_original>
